<compile_context>
chip_gen: v5e
topology: v5e:2x2
jax: 0.10.0
libtpu: 0.0.40
codegen_flags: <defaults>
</compile_context>

<pallas_src>
import jax
import jax.numpy as jnp
from jax.experimental import pallas as pl
from jax.experimental.pallas import tpu as pltpu

_NEG_INF = -1e30                 # large finite negative (avoids inf-inf NaN pitfalls)
_COMPUTE_DTYPE = jnp.bfloat16    # MXU-native on v5e / v6e / v7x

_vmem_limit_cache = None


def _vmem_limit():
    """3/4 of physical VMEM (capped), with a safe fallback if the query fails."""
    global _vmem_limit_cache
    if _vmem_limit_cache is None:
        try:
            cap = int(pltpu.get_tpu_info().vmem_capacity_bytes)
        except Exception:
            cap = 128 * 1024 * 1024
        _vmem_limit_cache = max(32 * 1024 * 1024,
                                min((cap * 3) // 4, 112 * 1024 * 1024))
    return _vmem_limit_cache


def _pick_tile(total: int, target: int) -> int:
    """Largest divisor of `total` <= target that is a multiple of 8.

    Callers pad `total` to a multiple of 8 first, so this never falls back to
    returning a huge non-factorable dimension.
    """
    if total <= target:
        return total
    for t in range(target, 7, -1):
        if total % t == 0 and t % 8 == 0:
            return t
    return total


def _pick_lane_tile(total: int, target: int = 512) -> int:
    """Largest divisor of `total` <= target that is a multiple of 128 (lane-dense)."""
    if total <= target:
        return total
    for t in range(target, 127, -128):
        if total % t == 0 and t % 128 == 0:
            return t
    return total   # weight output dims are multiples of 128 in practice


# ---------------------------------------------------------------------------
# Kernel 1: fused QKV projection  (x_flat @ W_qkv), no bias, bf16 MXU operands.
# ---------------------------------------------------------------------------
def _matmul_kernel(x_ref, w_ref, o_ref):
    o_ref[...] = jnp.dot(
        x_ref[...], w_ref[...], preferred_element_type=jnp.float32
    ).astype(o_ref.dtype)


def _project(x2, w, out_dtype=None):
    M, K = x2.shape
    N = w.shape[1]
    out_dtype = x2.dtype if out_dtype is None else out_dtype
    tm = _pick_tile(M, 256)
    tn = _pick_lane_tile(N, 512)
    # TODO(synk): for very large K (contraction), add a K grid axis with an f32
    #             VMEM accumulator; unnecessary at these model sizes.
    return pl.pallas_call(
        _matmul_kernel,
        out_shape=jax.ShapeDtypeStruct((M, N), out_dtype),
        grid_spec=pl.GridSpec(
            grid=(N // tn, M // tm),          # N outer: weight slab DMA'd once per j
            in_specs=[
                pl.BlockSpec((tm, K), lambda j, i: (i, 0)),
                pl.BlockSpec((K, tn), lambda j, i: (0, j)),
            ],
            out_specs=pl.BlockSpec((tm, tn), lambda j, i: (i, j)),
        ),
        compiler_params=pltpu.CompilerParams(
            dimension_semantics=("parallel", "parallel"),
            vmem_limit_bytes=_vmem_limit(),
        ),
    )(x2, w)


# ---------------------------------------------------------------------------
# Kernel 2: output projection with bias (bias added in f32).
# ---------------------------------------------------------------------------
def _matmul_bias_kernel(x_ref, w_ref, b_ref, o_ref):
    acc = jnp.dot(x_ref[...], w_ref[...], preferred_element_type=jnp.float32)
    acc = acc + b_ref[...].astype(jnp.float32)
    o_ref[...] = acc.astype(o_ref.dtype)


def _project_bias(x2, w, b, out_dtype):
    M, K = x2.shape
    N = w.shape[1]
    tm = _pick_tile(M, 256)
    tn = _pick_lane_tile(N, 512)
    return pl.pallas_call(
        _matmul_bias_kernel,
        out_shape=jax.ShapeDtypeStruct((M, N), out_dtype),
        grid_spec=pl.GridSpec(
            grid=(N // tn, M // tm),
            in_specs=[
                pl.BlockSpec((tm, K), lambda j, i: (i, 0)),
                pl.BlockSpec((K, tn), lambda j, i: (0, j)),
                pl.BlockSpec((1, tn), lambda j, i: (0, j)),
            ],
            out_specs=pl.BlockSpec((tm, tn), lambda j, i: (i, j)),
        ),
        compiler_params=pltpu.CompilerParams(
            dimension_semantics=("parallel", "parallel"),
            vmem_limit_bytes=_vmem_limit(),
        ),
    )(x2, w, b)


# ---------------------------------------------------------------------------
# Kernel 3: causal flash attention, heads batched per step.
#   grid = (B, q_tiles, kv_tiles); blocks are (1, n_head, tile, H).
# ---------------------------------------------------------------------------
def _flash_attn_kernel(q_ref, k_ref, v_ref, o_ref, m_sc, l_sc, acc_sc):
    qi = pl.program_id(1)
    ki = pl.program_id(2)
    tq = q_ref.shape[2]
    tk = k_ref.shape[2]
    q_start = qi * tq
    k_start = ki * tk

    @pl.when(ki == 0)
    def _init():
        m_sc[...] = jnp.full_like(m_sc, _NEG_INF)
        l_sc[...] = jnp.zeros_like(l_sc)
        acc_sc[...] = jnp.zeros_like(acc_sc)

    def _accumulate(apply_mask):
        q = q_ref[0]                     # (n_head, tq, H) bf16; 1/sqrt(H) folded into Wq
        k = k_ref[0]                     # (n_head, tk, H) bf16
        v = v_ref[0]                     # (n_head, tk, H) bf16
        # bf16 MXU operands, f32 accumulation.
        s = jnp.einsum('hqd,hkd->hqk', q, k,
                       preferred_element_type=jnp.float32)      # (n_head, tq, tk) f32
        if apply_mask:
            row = q_start + jax.lax.broadcasted_iota(jnp.int32, (tq, tk), 0)
            col = k_start + jax.lax.broadcasted_iota(jnp.int32, (tq, tk), 1)
            s = jnp.where(col <= row, s, _NEG_INF)               # mask & state stay f32
        m_prev = m_sc[...]
        m_new = jnp.maximum(m_prev, jnp.max(s, axis=-1, keepdims=True))
        alpha = jnp.exp(m_prev - m_new)
        p = jnp.exp(s - m_new)                                   # f32 elementwise (v5e-safe)
        l_sc[...] = alpha * l_sc[...] + jnp.sum(p, axis=-1, keepdims=True)
        acc_sc[...] = alpha * acc_sc[...] + jnp.einsum(
            'hqk,hkd->hqd', p.astype(v.dtype), v,                # p in bf16 for the MXU
            preferred_element_type=jnp.float32)
        m_sc[...] = m_new

    # Interior blocks: entirely below the causal diagonal -> no mask needed.
    @pl.when(k_start + tk - 1 <= q_start)
    def _interior():
        _accumulate(apply_mask=False)

    # Diagonal blocks: straddle the causal boundary -> build the iota mask.
    @pl.when(jnp.logical_and(k_start + tk - 1 > q_start,
                             k_start <= q_start + tq - 1))
    def _diag():
        _accumulate(apply_mask=True)

    # Fully-masked blocks (k_start > q_start + tq - 1): no compute, and their
    # K/V DMA is also skipped via the clamped index_map.

    @pl.when(ki == pl.num_programs(2) - 1)
    def _finalize():
        inv_l = pl.reciprocal(l_sc[...], approx=True)    # EUP slot, frees VALU
        o_ref[0] = (acc_sc[...] * inv_l).astype(o_ref.dtype)


def _flash_attention(q, k, v, *, tq=None, tk=None):
    B, NH, T, H = q.shape
    tq = _pick_tile(T, 256) if tq is None else tq
    tk = _pick_tile(T, 256) if tk is None else tk

    def q_map(b, qi, ki):
        return (b, 0, qi, 0)

    def kv_map(b, qi, ki):
        # Clamp kv block index: fully-masked causal blocks repeat the previous
        # block index, so Pallas skips the K/V DMA for them (~2x less KV traffic).
        last_needed = ((qi + 1) * tq - 1) // tk
        return (b, 0, jnp.minimum(ki, last_needed), 0)

    # TODO(synk): on v5e, if profiling shows exposed K/V DMA, add
    #             pipeline_mode=pl.Buffered(3) on the K/V specs.
    return pl.pallas_call(
        _flash_attn_kernel,
        out_shape=jax.ShapeDtypeStruct((B, NH, T, H), q.dtype),
        grid_spec=pl.GridSpec(
            grid=(B, T // tq, T // tk),
            in_specs=[
                pl.BlockSpec((1, NH, tq, H), q_map),
                pl.BlockSpec((1, NH, tk, H), kv_map),
                pl.BlockSpec((1, NH, tk, H), kv_map),
            ],
            out_specs=pl.BlockSpec((1, NH, tq, H), q_map),
            scratch_shapes=[
                pltpu.VMEM((NH, tq, 1), jnp.float32),   # running max m
                pltpu.VMEM((NH, tq, 1), jnp.float32),   # running denom l
                pltpu.VMEM((NH, tq, H), jnp.float32),   # output accumulator
            ],
        ),
        compiler_params=pltpu.CompilerParams(
            dimension_semantics=("parallel", "parallel", "arbitrary"),
            vmem_limit_bytes=_vmem_limit(),
        ),
    )(q, k, v)


# ---------------------------------------------------------------------------
# Full module forward (eval mode).
# ---------------------------------------------------------------------------
def parallel_multi_head_attention(x, w_c_attn, w_proj, b_proj, *, n_head):
    """x: (B,T,C); w_c_attn: (3C,C); w_proj: (C,C); b_proj: (C,) (PyTorch layouts)."""
    B, T, C = x.shape
    assert C % n_head == 0
    H = C // n_head
    orig_dtype = x.dtype

    # PyTorch Linear computes x @ W^T -> transpose to (C, 3C); columns = [Q | K | V].
    w_qkv = jnp.transpose(w_c_attn)
    # Fold the 1/sqrt(H) attention scale into the query weights (exact, free).
    scale = jnp.asarray(H ** -0.5, dtype=w_qkv.dtype)
    w_qkv = jnp.concatenate(
        [w_qkv[:, :C] * scale, w_qkv[:, C:2 * C], w_qkv[:, 2 * C:]], axis=1)

    # bf16 MXU operands (f32 accumulation inside every kernel).
    w_qkv = w_qkv.astype(_COMPUTE_DTYPE)
    w_p = jnp.transpose(w_proj).astype(_COMPUTE_DTYPE)
    b_p = b_proj.reshape(1, C).astype(jnp.float32)

    # Pad T to a multiple of 8 so tiling is always legal; padded key columns are
    # removed by the causal mask and padded query rows are sliced off below.
    Tp = ((T + 7) // 8) * 8
    if Tp != T:
        x = jnp.pad(x, ((0, 0), (0, Tp - T), (0, 0)))

    # (1) fused QKV projection, lane-dense (B*Tp, 3C) bf16 output.
    x2 = x.reshape(B * Tp, C).astype(_COMPUTE_DTYPE)
    qkv = _project(x2, w_qkv)                              # (B*Tp, 3C) bf16

    # Split into per-head Q, K, V: (B, n_head, Tp, H). Layout plumbing stays in XLA
    # (bf16, so half the bytes of the previous version).
    qkv = qkv.reshape(B, Tp, 3, n_head, H)
    q = jnp.transpose(qkv[:, :, 0], (0, 2, 1, 3))
    k = jnp.transpose(qkv[:, :, 1], (0, 2, 1, 3))
    v = jnp.transpose(qkv[:, :, 2], (0, 2, 1, 3))

    # (2) tiled causal flash attention (online softmax, no (T,T) materialization).
    attn = _flash_attention(q, k, v)                       # (B, n_head, Tp, H) bf16

    # Concat heads back: (B*Tp, C).
    attn = jnp.transpose(attn, (0, 2, 1, 3)).reshape(B * Tp, C)

    # (3) output projection with bias; residual dropout is identity in eval mode.
    out = _project_bias(attn, w_p, b_p, out_dtype=orig_dtype)
    out = out.reshape(B, Tp, C)
    if Tp != T:
        out = out[:, :T]
    return out


# ---------------------------------------------------------------------------
# Pure-JAX reference (mirrors the PyTorch forward in eval mode, full f32).
# ---------------------------------------------------------------------------
def reference(x, w_c_attn, w_proj, b_proj, n_head):
    B, T, C = x.shape
    H = C // n_head
    qkv = x @ w_c_attn.T
    q, k, v = jnp.split(qkv, 3, axis=2)

    def split_heads(t):
        return jnp.transpose(t.reshape(B, T, n_head, H), (0, 2, 1, 3))

    q, k, v = split_heads(q), split_heads(k), split_heads(v)
    att = jnp.einsum('bhqd,bhkd->bhqk', q, k) * (H ** -0.5)
    mask = jnp.tril(jnp.ones((T, T), dtype=bool))
    att = jnp.where(mask, att, -jnp.inf)
    att = jax.nn.softmax(att, axis=-1)
    out = jnp.einsum('bhqk,bhkd->bhqd', att, v)
    out = jnp.transpose(out, (0, 2, 1, 3)).reshape(B, T, C)
    return out @ w_proj.T + b_proj


if __name__ == "__main__":
    # Small shapes consistent with the module: block_size=T=8, n_embd=32, n_head=2.
    B, T = 2, 8
    n_embd, n_head = 32, 2          # head_size = 16

    key = jax.random.PRNGKey(0)
    kx, k1, k2, k3 = jax.random.split(key, 4)

    x = jax.random.normal(kx, (B, T, n_embd), dtype=jnp.float32)
    bound = 1.0 / (n_embd ** 0.5)   # PyTorch Linear default init U(-1/sqrt(C), 1/sqrt(C))
    w_c_attn = jax.random.uniform(k1, (3 * n_embd, n_embd), jnp.float32, -bound, bound)
    w_proj = jax.random.uniform(k2, (n_embd, n_embd), jnp.float32, -bound, bound)
    b_proj = jax.random.uniform(k3, (n_embd,), jnp.float32, -bound, bound)

    out = parallel_multi_head_attention(x, w_c_attn, w_proj, b_proj, n_head=n_head)
    out = jax.block_until_ready(out)
    assert out.shape == (B, T, n_embd)
    assert out.dtype == x.dtype

    ref = reference(x, w_c_attn, w_proj, b_proj, n_head)
    # Tolerance accommodates bf16 MXU operands and pl.reciprocal(approx=True)
    # against the full-f32 reference (observed error is ~1e-3-level).
    max_err = float(jnp.max(jnp.abs(out - ref)))
    assert jnp.allclose(out, ref, atol=2e-2, rtol=2e-2), f"max abs err = {max_err}"

    print("KERNEL_OK")
</pallas_src>

<mosaic_0001>
module attributes {stable_mosaic.version = 11 : i64} {
  func.func @_matmul_kernel(%arg0: i32, %arg1: i32, %arg2: memref<16x32xbf16, #tpu.memory_space<vmem>>, %arg3: memref<32x96xbf16, #tpu.memory_space<vmem>>, %arg4: memref<16x96xbf16, #tpu.memory_space<vmem>>) attributes {dimension_semantics = [#tpu.dimension_semantics<parallel>, #tpu.dimension_semantics<parallel>], iteration_bounds = array<i64: 1, 1>, scalar_prefetch = 0 : i64, scratch_operands = 0 : i64, tpu.core_type = #tpu.core_type<tc>, window_params = [{transform_indices = @transform_0, window_bounds = array<i64: 16, 32>}, {transform_indices = @transform_1, window_bounds = array<i64: 32, 96>}, {transform_indices = @transform_2, window_bounds = array<i64: 16, 96>}]} {
    %c0 = arith.constant 0 : index
    %c0_0 = arith.constant 0 : index
    %0 = vector.load %arg2[%c0, %c0_0] : memref<16x32xbf16, #tpu.memory_space<vmem>>, vector<16x32xbf16>
    %c0_1 = arith.constant 0 : index
    %c0_2 = arith.constant 0 : index
    %1 = vector.load %arg3[%c0_1, %c0_2] : memref<32x96xbf16, #tpu.memory_space<vmem>>, vector<32x96xbf16>
    %cst = arith.constant dense<0.000000e+00> : vector<16x96xf32>
    %2 = tpu.matmul %0, %1, %cst {dimension_numbers = #tpu.dot_dimension_numbers<[1], [0], [0], [1], [0, 0, 1, 1], [], []>} : vector<16x32xbf16>, vector<32x96xbf16>, vector<16x96xf32> -> vector<16x96xf32>
    %3 = arith.truncf %2 : vector<16x96xf32> to vector<16x96xbf16>
    %c0_3 = arith.constant 0 : index
    %c0_4 = arith.constant 0 : index
    %4 = vector.load %arg4[%c0_3, %c0_4] : memref<16x96xbf16, #tpu.memory_space<vmem>>, vector<16x96xbf16>
    tpu.vector_store %arg4[%c0_3, %c0_4], %3 {strides = array<i32>} : memref<16x96xbf16, #tpu.memory_space<vmem>>, vector<16x96xbf16>,
    return
  }
  func.func @transform_0(%arg0: i32, %arg1: i32) -> (i32, i32) {
    %c0_i32 = arith.constant 0 : i32
    %c0_i32_0 = arith.constant 0 : i32
    return %arg1, %c0_i32 : i32, i32
  }
  func.func @transform_1(%arg0: i32, %arg1: i32) -> (i32, i32) {
    %c0_i32 = arith.constant 0 : i32
    %c0_i32_0 = arith.constant 0 : i32
    return %c0_i32, %arg0 : i32, i32
  }
  func.func @transform_2(%arg0: i32, %arg1: i32) -> (i32, i32) {
    %c0_i32 = arith.constant 0 : i32
    return %arg1, %arg0 : i32, i32
  }
}

</mosaic_0001>

<llo_original>
// kernel: tpu_custom_call.1
$region0: #{tpu_custom_call.1}
  #allocation0 [shape = 'u32[]', space=smem, size = 0x4, offset = 0x4, fixed_abs, tag = 'smem constant byte address 0x4 - core index']
  #allocation1 [shape = 'u32[72,128]{1,0:T(1,128)}', space=vmem, size = 0x9000, scoped, tag = 'internal scratch']
  %s0 = inlined_call_operand.hbm [shape: bf16[16,32], index: 0, kind: input, shape index: {}]
  %s1 = inlined_call_operand.hbm [shape: bf16[32,96], index: 1, kind: input, shape index: {}]
  %s2 = inlined_call_operand.hbm [shape: bf16[16,96], index: 2, kind: output, shape index: {}]
  %s3 = sld [smem:[#allocation0]]
  $region26: #{tpu_custom_call.1} parent=0
    _
  %s5 = ssub.s32 1, %s3
  %s6 = scalar_select 0, %s5, %s3
  $region1: #{tpu_custom_call.1} parent=0
    #allocation2 [shape = 'u8[4096]{0}', space=vmem, size = 0x1000, scoped, tag = 'input window, operand 0, single buffered']
    #allocation3 [shape = 's32[1]{0}', space=sflag, size = 0x4, scoped, tag = 'scoped memory for tpu_custom_call.1']
    #allocation4 [shape = 's32[1]{0}', space=sflag, size = 0x4, scoped, tag = 'scoped memory for tpu_custom_call.1']
    #allocation5 [shape = 'u8[8192]{0}', space=vmem, size = 0x2000, scoped, tag = 'input window, operand 1, single buffered']
    #allocation6 [shape = 's32[1]{0}', space=sflag, size = 0x4, scoped, tag = 'scoped memory for tpu_custom_call.1']
    #allocation7 [shape = 'u8[4096]{0}', space=vmem, size = 0x1000, scoped, tag = 'output window, operand 0, single buffered']
    %7 = vsyncpa [#allocation3], 0
    %8 = vsyncpa [#allocation6], 0
    %9 = vsyncpa [#allocation4], 0
    // Predicated region
    $region2: #{tpu_custom_call.1} parent=1 // pred_check
      _
    $region3: #{tpu_custom_call.1} parent=1 // pred_check_branch
      %11 = sbr.rel (0) target = $region5
    $region4: #{tpu_custom_call.1} parent=1 // pred_region
      %13 = vsyncadd [#allocation3], 0
      %s14 = sshll.u32 %s0, 4
      %s15 = int_to_ptr.hbm [resolvable:$true] %s14
      %s16 = sshll.u32 [#allocation2], 4
      %s17 = int_to_ptr.vmem [resolvable:$true] %s16
      %22 = dma.hbm_to_vmem [thread:$0]  %s15, 128, %s17, [#allocation3], 64, 64, 4
    $region5: #{tpu_custom_call.1} parent=1 // pred_fallthru
      _
    // Predicated region
    $region6: #{tpu_custom_call.1} parent=1 // pred_check
      _
    $region7: #{tpu_custom_call.1} parent=1 // pred_check_branch
      %24 = sbr.rel (0) target = $region9
    $region8: #{tpu_custom_call.1} parent=1 // pred_region
      %26 = vsyncadd [#allocation6], 0
      %s27 = sshll.u32 %s1, 4
      %s28 = int_to_ptr.hbm [resolvable:$true] %s27
      %s29 = sshll.u32 [#allocation5], 4
      %s30 = int_to_ptr.vmem [resolvable:$true] %s29
      %35 = dma.hbm_to_vmem [thread:$0]  %s28, 256, %s30, [#allocation6], 64, 64, 4
    $region9: #{tpu_custom_call.1} parent=1 // pred_fallthru
      _
    // Predicated region
    $region10: #{tpu_custom_call.1} parent=1 // pred_check
      _
    $region11: #{tpu_custom_call.1} parent=1 // pred_check_branch
      %37 = sbr.rel (0) target = $region13
    $region12: #{tpu_custom_call.1} parent=1 // pred_region
      %39 = dma.done [#allocation3], 128
    $region13: #{tpu_custom_call.1} parent=1 // pred_fallthru
      _
    // Predicated region
    $region14: #{tpu_custom_call.1} parent=1 // pred_check
      _
    $region15: #{tpu_custom_call.1} parent=1 // pred_check_branch
      %41 = sbr.rel (0) target = $region17
    $region16: #{tpu_custom_call.1} parent=1 // pred_region
      %43 = dma.done [#allocation6], 256
    $region17: #{tpu_custom_call.1} parent=1 // pred_fallthru
      _
    %v45 = vld [vmem:[#allocation2] sm:$0xf]
    %v46 = vld [vmem:[#allocation2 + $0x4] sm:$0xf]
    %v47 = vld [vmem:[#allocation5] sm:$0xf]
    %v48 = vld [vmem:[#allocation5 + $0x4] sm:$0xf]
    %v49 = vld [vmem:[#allocation5 + $0x8] sm:$0xf]
    %v50 = vld [vmem:[#allocation5 + $0xc] sm:$0xf]
    %v53 = vunpack.c.l.b16 %v45
    %v54 = vunpack.c.l.b16 %v46
    %v55 = vpack.c.b16 %v54, %v53
    %v60 = vunpack.c.l.b16 %v47
    %v61 = vunpack.c.l.b16 %v48
    %v62 = vunpack.c.l.b16 %v49
    %v63 = vunpack.c.l.b16 %v50
    %v64 = vpack.c.b16 %v61, %v60
    %v65 = vpack.c.b16 %v63, %v62
    %vm68 = vcmask 261120
    %v70 = vsel %vm68, %v55, 0
    %72 = vmatpush.bf16.msra.mxu0 0
    %73 = vmatpush.bf16.msra.mxu0 0
    %74 = vmatpush.bf16.msra.mxu0 0
    %75 = vmatpush.bf16.msra.mxu0 0
    %76 = vmatpush.bf16.msra.mxu0 0
    %77 = vmatpush.bf16.msra.mxu0 0
    %78 = vmatpush.bf16.msra.mxu0 %v65
    %79 = vmatpush.bf16.msra.mxu0 %v64
    %80 = vmatmul.bf16.gmra.mxu0 %v70
    %v81 = vpop.f32.mrf.mxu0
    %v82 = vadd.f32 0.0, %v81
    %v83 = vpop.f32.mrf.mxu0
    %v84 = vadd.f32 0.0, %v83
    %85 = vdwg.mxu0
    %v86 = vpack.c.bf16 %v82, %v82
    %v87 = vpack.c.bf16 %v84, %v84
    %vm88 = vcmask 781312
    %89 = vst.msk [vmem:[#allocation7] sm:$0xf] %vm88, %v86
    %90 = vst.msk [vmem:[#allocation7 + $0x4] sm:$0xf] %vm88, %v87
    // Predicated region
    $region18: #{tpu_custom_call.1} parent=1 // pred_check
      _
    $region19: #{tpu_custom_call.1} parent=1 // pred_check_branch
      %92 = sbr.rel (0) target = $region21
    $region20: #{tpu_custom_call.1} parent=1 // pred_region
      %94 = vsyncadd [#allocation4], 0
      %s95 = sshll.u32 [#allocation7], 4
      %s96 = int_to_ptr.vmem [resolvable:$true] %s95
      %s97 = sshll.u32 %s2, 4
      %s98 = int_to_ptr.hbm [resolvable:$true] %s97
      %103 = dma.vmem_to_hbm [thread:$0]  %s96, 128, %s98, [#allocation4], 64, 64, 4
    $region21: #{tpu_custom_call.1} parent=1 // pred_fallthru
      _
    // Predicated region
    $region22: #{tpu_custom_call.1} parent=1 // pred_check
      _
    $region23: #{tpu_custom_call.1} parent=1 // pred_check_branch
      %105 = sbr.rel (0) target = $region25
    $region24: #{tpu_custom_call.1} parent=1 // pred_region
      %107 = dma.done [#allocation4], 128
    $region25: #{tpu_custom_call.1} parent=1 // pred_fallthru
      _
    %108 = vsyncpa [#allocation3], 1
    %109 = vsyncpa [#allocation6], 1
    %110 = vsyncpa [#allocation4], 1

</llo_original>
